<compile_context>
chip_gen: v7x
topology: tpu7x:2x2x1
jax: 0.10.0
libtpu: 0.0.40
codegen_flags: <defaults>
</compile_context>

<pallas_src>
import jax
import jax.numpy as jnp
from jax.experimental import pallas as pl
from jax.experimental.pallas import tpu as pltpu

TM = 256       # tokens per output tile (MXU M dim; use 128 on v5e if desired)
TV_MAX = 512   # max vocab rows per table tile (MXU K dim), 128-aligned


def _round_up(x: int, m: int) -> int:
    return ((x + m - 1) // m) * m


def _embedding_kernel(ids_ref, emb_ref, out_ref, acc_ref):
    # ids_ref : (1, 1, TM) int32   -- this token tile's ids (lane-dense)
    # emb_ref : (TV, D)            -- one vocab tile of the table, native dtype
    # out_ref : (TM, D)            -- output tile (resident across vocab axis)
    # acc_ref : (TM, D) float32    -- VMEM accumulator scratch
    k = pl.program_id(1)
    tm = out_ref.shape[0]
    tv = emb_ref.shape[0]

    @pl.when(k == 0)
    def _():
        acc_ref[...] = jnp.zeros_like(acc_ref)

    ids = ids_ref[0, 0, :]                                          # (TM,)
    col = jax.lax.broadcasted_iota(jnp.int32, (tm, tv), 1)          # vocab on lanes
    # One-hot in the table's dtype: values are exactly 0.0 / 1.0 -> bit-exact
    # row selection, and no full-table upcast per step.
    onehot = (col == (ids[:, None] - k * tv)).astype(emb_ref.dtype)  # (TM, TV)
    acc_ref[...] += jnp.dot(onehot, emb_ref[...],
                            preferred_element_type=jnp.float32)

    @pl.when(k == pl.num_programs(1) - 1)
    def _():
        out_ref[...] = acc_ref[...].astype(out_ref.dtype)


def pretrained_word_embedding_fwd(inputs, weights, *, tm=TM, tv_max=TV_MAX):
    """Eval-mode forward of PreTrainedWordEmbedding.

    inputs : (batch, seq) int32 token ids in [0, V)
    weights: (V, D) table == concat(special_embeddings, word_embeddings)
    returns: (batch, seq, D) in weights.dtype
    """
    b, s = inputs.shape
    v, d = weights.shape

    # Token tiling: pad the flattened token stream to a multiple of TM.
    n = b * s
    n_pad = _round_up(n, tm)
    num_token_tiles = n_pad // tm
    ids = inputs.reshape(-1).astype(jnp.int32)
    ids = jnp.pad(ids, (0, n_pad - n))              # padded ids gather row 0; sliced off
    ids = ids.reshape(num_token_tiles, 1, tm)       # lane-dense (1, 1, TM) blocks

    # Vocab tiling: 128-aligned tiles; pad the table with zero rows.
    tv = min(tv_max, _round_up(v, 128))
    v_pad = _round_up(v, tv)
    num_vocab_tiles = v_pad // tv
    table = jnp.pad(weights, ((0, v_pad - v), (0, 0)))

    out_flat = pl.pallas_call(
        _embedding_kernel,
        out_shape=jax.ShapeDtypeStruct((n_pad, d), weights.dtype),
        grid_spec=pltpu.PrefetchScalarGridSpec(
            num_scalar_prefetch=0,
            grid=(num_token_tiles, num_vocab_tiles),        # reduction axis last
            in_specs=[
                pl.BlockSpec((1, 1, tm), lambda i, k: (i, 0, 0)),   # ids tile
                pl.BlockSpec((tv, d), lambda i, k: (k, 0)),         # table tile
            ],
            out_specs=pl.BlockSpec((tm, d), lambda i, k: (i, 0)),
            scratch_shapes=[pltpu.VMEM((tm, d), jnp.float32)],
        ),
        compiler_params=pltpu.CompilerParams(
            dimension_semantics=("parallel", "arbitrary"),
            vmem_limit_bytes=32 * 1024 * 1024,
        ),
    )(ids, table)

    return out_flat[:n].reshape(b, s, d)


if __name__ == "__main__":
    # Module config: a vocab with 4 special tokens + 60 pretrained word vectors,
    # dim = 128, pad_index = 0 (forward-irrelevant).
    num_specials = 4
    word_vocab = 60
    dim = 128

    key = jax.random.PRNGKey(0)
    k_word, k_spec, k_ids = jax.random.split(key, 3)
    # Stand-in for np.load(path).astype(np.float32): pretrained word table.
    word_embeddings = jax.random.normal(k_word, (word_vocab, dim), dtype=jnp.float32)
    # NormalInitializer() on the special-token rows.
    special_embeddings = jax.random.normal(k_spec, (num_specials, dim), dtype=jnp.float32)
    # PreTrainedWordEmbedding.weights == torch.cat((special, word)).
    weights = jnp.concatenate([special_embeddings, word_embeddings], axis=0)

    batch, seq = 2, 16
    vocab_size = num_specials + word_vocab
    inputs = jax.random.randint(k_ids, (batch, seq), 0, vocab_size, dtype=jnp.int32)

    out = pretrained_word_embedding_fwd(inputs, weights)
    out = jax.block_until_ready(out)

    # Reference: plain JAX gather (== F.embedding forward).
    ref = jnp.take(weights, inputs, axis=0)
    assert out.shape == (batch, seq, dim), out.shape
    assert out.dtype == weights.dtype, out.dtype
    assert bool(jnp.array_equal(out, ref)), "mismatch vs reference"

    print("KERNEL_OK")
</pallas_src>

<mosaic_0001>
module attributes {stable_mosaic.version = 11 : i64} {
  func.func @_embedding_kernel(%arg0: i32, %arg1: i32, %arg2: memref<1x1x256xi32, #tpu.memory_space<vmem>>, %arg3: memref<128x128xf32, #tpu.memory_space<vmem>>, %arg4: memref<256x128xf32, #tpu.memory_space<vmem>>, %arg5: memref<256x128xf32, #tpu.memory_space<vmem>>) attributes {dimension_semantics = [#tpu.dimension_semantics<parallel>, #tpu.dimension_semantics<arbitrary>], iteration_bounds = array<i64: 1, 1>, scalar_prefetch = 0 : i64, scratch_operands = 1 : i64, tpu.core_type = #tpu.core_type<tc>, window_params = [{transform_indices = @transform_0, window_bounds = array<i64: 1, 1, 256>}, {transform_indices = @transform_1, window_bounds = array<i64: 128, 128>}, {transform_indices = @transform_2, window_bounds = array<i64: 256, 128>}]} {
    %c0_i32 = arith.constant 0 : i32
    %0 = arith.cmpi eq, %arg1, %c0_i32 : i32
    %1 = arith.extui %0 : i1 to i32
    %c0_i32_0 = arith.constant 0 : i32
    %2 = arith.cmpi ne, %1, %c0_i32_0 : i32
    scf.if %2 {
      %cst_11 = arith.constant 0.000000e+00 : f32
      %22 = vector.broadcast %cst_11 : f32 to vector<256x128xf32>
      %c0_12 = arith.constant 0 : index
      %c0_13 = arith.constant 0 : index
      %23 = vector.load %arg5[%c0_12, %c0_13] : memref<256x128xf32, #tpu.memory_space<vmem>>, vector<256x128xf32>
      tpu.vector_store %arg5[%c0_12, %c0_13], %22 {strides = array<i32>} : memref<256x128xf32, #tpu.memory_space<vmem>>, vector<256x128xf32>,
    } else {
    }
    %c0 = arith.constant 0 : index
    %c0_1 = arith.constant 0 : index
    %c0_2 = arith.constant 0 : index
    %3 = vector.load %arg2[%c0, %c0_1, %c0_2] : memref<1x1x256xi32, #tpu.memory_space<vmem>>, vector<1x1x256xi32>
    %4 = vector.shape_cast %3 : vector<1x1x256xi32> to vector<256xi32>
    %5 = tpu.iota {dimensions = array<i32: 1>} : vector<256x128xi32>
    %6 = vector.shape_cast %4 : vector<256xi32> to vector<256x1xi32>
    %c128_i32 = arith.constant 128 : i32
    %7 = arith.muli %arg1, %c128_i32 : i32
    %8 = vector.broadcast %7 : i32 to vector<256x1xi32>
    %9 = arith.subi %6, %8 : vector<256x1xi32>
    %10 = vector.broadcast %9 : vector<256x1xi32> to vector<256x128xi32>
    %11 = arith.cmpi eq, %5, %10 : vector<256x128xi32>
    %12 = arith.extui %11 : vector<256x128xi1> to vector<256x128xi32>
    %13 = arith.sitofp %12 : vector<256x128xi32> to vector<256x128xf32>
    %c0_3 = arith.constant 0 : index
    %c0_4 = arith.constant 0 : index
    %14 = vector.load %arg5[%c0_3, %c0_4] : memref<256x128xf32, #tpu.memory_space<vmem>>, vector<256x128xf32>
    %c0_5 = arith.constant 0 : index
    %c0_6 = arith.constant 0 : index
    %15 = vector.load %arg3[%c0_5, %c0_6] : memref<128x128xf32, #tpu.memory_space<vmem>>, vector<128x128xf32>
    %cst = arith.constant dense<0.000000e+00> : vector<256x128xf32>
    %16 = tpu.matmul %13, %15, %cst {dimension_numbers = #tpu.dot_dimension_numbers<[1], [0], [0], [1], [0, 0, 1, 1], [], []>} : vector<256x128xf32>, vector<128x128xf32>, vector<256x128xf32> -> vector<256x128xf32>
    %17 = arith.addf %14, %16 : vector<256x128xf32>
    %c0_7 = arith.constant 0 : index
    %c0_8 = arith.constant 0 : index
    %18 = vector.load %arg5[%c0_7, %c0_8] : memref<256x128xf32, #tpu.memory_space<vmem>>, vector<256x128xf32>
    tpu.vector_store %arg5[%c0_7, %c0_8], %17 {strides = array<i32>} : memref<256x128xf32, #tpu.memory_space<vmem>>, vector<256x128xf32>,
    %c0_i32_9 = arith.constant 0 : i32
    %19 = arith.cmpi eq, %arg1, %c0_i32_9 : i32
    %20 = arith.extui %19 : i1 to i32
    %c0_i32_10 = arith.constant 0 : i32
    %21 = arith.cmpi ne, %20, %c0_i32_10 : i32
    scf.if %21 {
      %c0_11 = arith.constant 0 : index
      %c0_12 = arith.constant 0 : index
      %22 = vector.load %arg5[%c0_11, %c0_12] : memref<256x128xf32, #tpu.memory_space<vmem>>, vector<256x128xf32>
      %c0_13 = arith.constant 0 : index
      %c0_14 = arith.constant 0 : index
      %23 = vector.load %arg4[%c0_13, %c0_14] : memref<256x128xf32, #tpu.memory_space<vmem>>, vector<256x128xf32>
      tpu.vector_store %arg4[%c0_13, %c0_14], %22 {strides = array<i32>} : memref<256x128xf32, #tpu.memory_space<vmem>>, vector<256x128xf32>,
    } else {
    }
    return
  }
  func.func @transform_0(%arg0: i32, %arg1: i32) -> (i32, i32, i32) {
    %c0_i32 = arith.constant 0 : i32
    %c0_i32_0 = arith.constant 0 : i32
    %c0_i32_1 = arith.constant 0 : i32
    return %arg0, %c0_i32, %c0_i32_0 : i32, i32, i32
  }
  func.func @transform_1(%arg0: i32, %arg1: i32) -> (i32, i32) {
    %c0_i32 = arith.constant 0 : i32
    %c0_i32_0 = arith.constant 0 : i32
    return %arg1, %c0_i32 : i32, i32
  }
  func.func @transform_2(%arg0: i32, %arg1: i32) -> (i32, i32) {
    %c0_i32 = arith.constant 0 : i32
    %c0_i32_0 = arith.constant 0 : i32
    return %arg0, %c0_i32 : i32, i32
  }
}

</mosaic_0001>

<llo_original>
// kernel: tpu_custom_call.1
$region0: #{tpu_custom_call.1}
  #allocation0 [shape = 'u32[]', space=smem, size = 0x4, offset = 0x4, fixed_abs, tag = 'smem constant byte address 0x4 - core index']
  #allocation1 [shape = 'u32[144,128]{1,0:T(1,128)}', space=vmem, size = 0x12000, scoped, tag = 'internal scratch']
  #allocation2 [shape = 'f32[256,128]{1,0:T(8,128)}', space=vmem, size = 0x20000, scoped, tag = 'scratch operand']
  %s0 = inlined_call_operand.hbm [shape: s32[1,1,256], index: 0, kind: input, shape index: {}]
  %s1 = inlined_call_operand.hbm [shape: f32[128,128], index: 1, kind: input, shape index: {}]
  %s2 = inlined_call_operand.hbm [shape: f32[256,128], index: 2, kind: output, shape index: {}]
  %s3 = sld [smem:[#allocation0]]
  $region34: #{tpu_custom_call.1} parent=0
    _
  %s5 = ssub.s32 1, %s3
  %s6 = scalar_select 0, %s5, %s3
  $region1: #{tpu_custom_call.1} parent=0
    #allocation3 [shape = 'u8[1024]{0}', space=vmem, size = 0x400, scoped, tag = 'input window, operand 0, single buffered']
    #allocation4 [shape = 's32[1]{0}', space=sflag, size = 0x4, scoped, tag = 'scoped memory for tpu_custom_call.1']
    #allocation5 [shape = 's32[1]{0}', space=sflag, size = 0x4, scoped, tag = 'scoped memory for tpu_custom_call.1']
    #allocation6 [shape = 'u8[65536]{0}', space=vmem, size = 0x10000, scoped, tag = 'input window, operand 1, single buffered']
    #allocation7 [shape = 's32[1]{0}', space=sflag, size = 0x4, scoped, tag = 'scoped memory for tpu_custom_call.1']
    #allocation8 [shape = 'u8[131072]{0}', space=vmem, size = 0x20000, scoped, tag = 'output window, operand 0, single buffered']
    %7 = vsyncpa [#allocation4], 0
    %8 = vsyncpa [#allocation7], 0
    %9 = vsyncpa [#allocation5], 0
    // Predicated region
    $region2: #{tpu_custom_call.1} parent=1 // pred_check
      _
    $region3: #{tpu_custom_call.1} parent=1 // pred_check_branch
      %11 = sbr.rel (0) target = $region5
    $region4: #{tpu_custom_call.1} parent=1 // pred_region
      %s13 = ssub.s32 32, 32
      %14 = vsyncadd [#allocation4], %s13
      %s16 = sshll.u32 [#allocation3], 4
      %s17 = int_to_ptr.vmem [resolvable:$true] %s16
      %19 = dma.hbm_to_vmem [thread:$0]  %s0, 32, %s17, [#allocation4]
    $region5: #{tpu_custom_call.1} parent=1 // pred_fallthru
      _
    // Predicated region
    $region6: #{tpu_custom_call.1} parent=1 // pred_check
      _
    $region7: #{tpu_custom_call.1} parent=1 // pred_check_branch
      %21 = sbr.rel (0) target = $region9
    $region8: #{tpu_custom_call.1} parent=1 // pred_region
      %s23 = ssub.s32 2048, 2048
      %24 = vsyncadd [#allocation7], %s23
      %s25 = sshll.u32 [#allocation6], 4
      %s26 = int_to_ptr.vmem [resolvable:$true] %s25
      %31 = dma.hbm_to_vmem [thread:$0]  %s1, 2048, %s26, [#allocation7], 128, 128, 8
    $region9: #{tpu_custom_call.1} parent=1 // pred_fallthru
      _
    // Predicated region
    $region10: #{tpu_custom_call.1} parent=1 // pred_check
      _
    $region11: #{tpu_custom_call.1} parent=1 // pred_check_branch
      %33 = sbr.rel (0) target = $region13
    $region12: #{tpu_custom_call.1} parent=1 // pred_region
      %34 = dma.done [#allocation4], 32
    $region13: #{tpu_custom_call.1} parent=1 // pred_fallthru
      _
    // Predicated region
    $region14: #{tpu_custom_call.1} parent=1 // pred_check
      _
    $region15: #{tpu_custom_call.1} parent=1 // pred_check_branch
      %36 = sbr.rel (0) target = $region17
    $region16: #{tpu_custom_call.1} parent=1 // pred_region
      %37 = dma.done [#allocation7], 2048
    $region17: #{tpu_custom_call.1} parent=1 // pred_fallthru
      _
    %p38 = scmp.eq.s32.totalorder 0, 0
    // Predicated region
    $region18: #{tpu_custom_call.1} parent=1 // pred_check
      %p39 = pneg %p38
    $region19: #{tpu_custom_call.1} parent=1 // pred_check_branch
      %41 = sbr.rel (%p39) target = $region21
    $region20: #{tpu_custom_call.1} parent=1 // pred_region
      %42 = vst [vmem:[#allocation2] sm:$0xff] 0.0
      %43 = vst [vmem:[#allocation2 + $0x8] sm:$0xff] 0.0
      %44 = vst [vmem:[#allocation2 + $0x10] sm:$0xff] 0.0
      %45 = vst [vmem:[#allocation2 + $0x18] sm:$0xff] 0.0
      %46 = vst [vmem:[#allocation2 + $0x20] sm:$0xff] 0.0
      %47 = vst [vmem:[#allocation2 + $0x28] sm:$0xff] 0.0
      %48 = vst [vmem:[#allocation2 + $0x30] sm:$0xff] 0.0
      %49 = vst [vmem:[#allocation2 + $0x38] sm:$0xff] 0.0
      %50 = vst [vmem:[#allocation2 + $0x40] sm:$0xff] 0.0
      %51 = vst [vmem:[#allocation2 + $0x48] sm:$0xff] 0.0
      %52 = vst [vmem:[#allocation2 + $0x50] sm:$0xff] 0.0
      %53 = vst [vmem:[#allocation2 + $0x58] sm:$0xff] 0.0
      %54 = vst [vmem:[#allocation2 + $0x60] sm:$0xff] 0.0
      %55 = vst [vmem:[#allocation2 + $0x68] sm:$0xff] 0.0
      %56 = vst [vmem:[#allocation2 + $0x70] sm:$0xff] 0.0
      %57 = vst [vmem:[#allocation2 + $0x78] sm:$0xff] 0.0
      %58 = vst [vmem:[#allocation2 + $0x80] sm:$0xff] 0.0
      %59 = vst [vmem:[#allocation2 + $0x88] sm:$0xff] 0.0
      %60 = vst [vmem:[#allocation2 + $0x90] sm:$0xff] 0.0
      %61 = vst [vmem:[#allocation2 + $0x98] sm:$0xff] 0.0
      %62 = vst [vmem:[#allocation2 + $0xa0] sm:$0xff] 0.0
      %63 = vst [vmem:[#allocation2 + $0xa8] sm:$0xff] 0.0
      %64 = vst [vmem:[#allocation2 + $0xb0] sm:$0xff] 0.0
      %65 = vst [vmem:[#allocation2 + $0xb8] sm:$0xff] 0.0
      %66 = vst [vmem:[#allocation2 + $0xc0] sm:$0xff] 0.0
      %67 = vst [vmem:[#allocation2 + $0xc8] sm:$0xff] 0.0
      %68 = vst [vmem:[#allocation2 + $0xd0] sm:$0xff] 0.0
      %69 = vst [vmem:[#allocation2 + $0xd8] sm:$0xff] 0.0
      %70 = vst [vmem:[#allocation2 + $0xe0] sm:$0xff] 0.0
      %71 = vst [vmem:[#allocation2 + $0xe8] sm:$0xff] 0.0
      %72 = vst [vmem:[#allocation2 + $0xf0] sm:$0xff] 0.0
      %73 = vst [vmem:[#allocation2 + $0xf8] sm:$0xff] 0.0
    $region21: #{tpu_custom_call.1} parent=1 // pred_fallthru
      _
    %v74 = vld [vmem:[#allocation3] sm:$0x3]
    %v75 = vlaneseq
    %v76 = vand.u32 %v75, 127
    %v77 = vlaneseq
    %v78 = vshrl.u32 %v77, 7
    %v79 = vsub.s32 0, %v78
    %v80 = vrot.slane %v74, %v79
    %v81 = vlaneseq
    %v82 = vshrl.u32 %v81, 7
    %v83 = vsub.s32 1, %v82
    %v84 = vrot.slane %v74, %v83
    %v85 = vlaneseq
    %v86 = vshrl.u32 %v85, 7
    %v87 = vsub.s32 0, %v86
    %v88 = vrot.slane %v80, %v87
    %90 = vbcast.lane.b32.xlu0 %v88, 256
    %v91 = vpop.permute.xlu0 %90
    %s93 = sor.u32 256, 8
    %94 = vbcast.lane.b32.xlu0 %v88, %s93
    %v95 = vpop.permute.xlu0 %94
    %s97 = sor.u32 256, 16
    %98 = vbcast.lane.b32.xlu0 %v88, %s97
    %v99 = vpop.permute.xlu0 %98
    %s101 = sor.u32 256, 24
    %102 = vbcast.lane.b32.xlu0 %v88, %s101
    %v103 = vpop.permute.xlu0 %102
    %s105 = sor.u32 256, 32
    %106 = vbcast.lane.b32.xlu0 %v88, %s105
    %v107 = vpop.permute.xlu0 %106
    %s109 = sor.u32 256, 40
    %110 = vbcast.lane.b32.xlu0 %v88, %s109
    %v111 = vpop.permute.xlu0 %110
    %s113 = sor.u32 256, 48
    %114 = vbcast.lane.b32.xlu0 %v88, %s113
    %v115 = vpop.permute.xlu0 %114
    %s117 = sor.u32 256, 56
    %118 = vbcast.lane.b32.xlu0 %v88, %s117
    %v119 = vpop.permute.xlu0 %118
    %s121 = sor.u32 256, 64
    %122 = vbcast.lane.b32.xlu0 %v88, %s121
    %v123 = vpop.permute.xlu0 %122
    %s125 = sor.u32 256, 72
    %126 = vbcast.lane.b32.xlu0 %v88, %s125
    %v127 = vpop.permute.xlu0 %126
    %s129 = sor.u32 256, 80
    %130 = vbcast.lane.b32.xlu0 %v88, %s129
    %v131 = vpop.permute.xlu0 %130
    %s133 = sor.u32 256, 88
    %134 = vbcast.lane.b32.xlu0 %v88, %s133
    %v135 = vpop.permute.xlu0 %134
    %s137 = sor.u32 256, 96
    %138 = vbcast.lane.b32.xlu0 %v88, %s137
    %v139 = vpop.permute.xlu0 %138
    %s141 = sor.u32 256, 104
    %142 = vbcast.lane.b32.xlu0 %v88, %s141
    %v143 = vpop.permute.xlu0 %142
    %s145 = sor.u32 256, 112
    %146 = vbcast.lane.b32.xlu0 %v88, %s145
    %v147 = vpop.permute.xlu0 %146
    %s149 = sor.u32 256, 120
    %150 = vbcast.lane.b32.xlu0 %v88, %s149
    %v151 = vpop.permute.xlu0 %150
    %v152 = vlaneseq
    %v153 = vshrl.u32 %v152, 7
    %v154 = vsub.s32 0, %v153
    %v155 = vrot.slane %v84, %v154
    %157 = vbcast.lane.b32.xlu0 %v155, 256
    %v158 = vpop.permute.xlu0 %157
    %s160 = sor.u32 256, 8
    %161 = vbcast.lane.b32.xlu0 %v155, %s160
    %v162 = vpop.permute.xlu0 %161
    %s164 = sor.u32 256, 16
    %165 = vbcast.lane.b32.xlu0 %v155, %s164
    %v166 = vpop.permute.xlu0 %165
    %s168 = sor.u32 256, 24
    %169 = vbcast.lane.b32.xlu0 %v155, %s168
    %v170 = vpop.permute.xlu0 %169
    %s172 = sor.u32 256, 32
    %173 = vbcast.lane.b32.xlu0 %v155, %s172
    %v174 = vpop.permute.xlu0 %173
    %s176 = sor.u32 256, 40
    %177 = vbcast.lane.b32.xlu0 %v155, %s176
    %v178 = vpop.permute.xlu0 %177
    %s180 = sor.u32 256, 48
    %181 = vbcast.lane.b32.xlu0 %v155, %s180
    %v182 = vpop.permute.xlu0 %181
    %s184 = sor.u32 256, 56
    %185 = vbcast.lane.b32.xlu0 %v155, %s184
    %v186 = vpop.permute.xlu0 %185
    %s188 = sor.u32 256, 64
    %189 = vbcast.lane.b32.xlu0 %v155, %s188
    %v190 = vpop.permute.xlu0 %189
    %s192 = sor.u32 256, 72
    %193 = vbcast.lane.b32.xlu0 %v155, %s192
    %v194 = vpop.permute.xlu0 %193
    %s196 = sor.u32 256, 80
    %197 = vbcast.lane.b32.xlu0 %v155, %s196
    %v198 = vpop.permute.xlu0 %197
    %s200 = sor.u32 256, 88
    %201 = vbcast.lane.b32.xlu0 %v155, %s200
    %v202 = vpop.permute.xlu0 %201
    %s204 = sor.u32 256, 96
    %205 = vbcast.lane.b32.xlu0 %v155, %s204
    %v206 = vpop.permute.xlu0 %205
    %s208 = sor.u32 256, 104
    %209 = vbcast.lane.b32.xlu0 %v155, %s208
    %v210 = vpop.permute.xlu0 %209
    %s212 = sor.u32 256, 112
    %213 = vbcast.lane.b32.xlu0 %v155, %s212
    %v214 = vpop.permute.xlu0 %213
    %s216 = sor.u32 256, 120
    %217 = vbcast.lane.b32.xlu0 %v155, %s216
    %v218 = vpop.permute.xlu0 %217
    %s219 = smul.u32 0, 128
    %v220 = vstv %s219
    %v221 = vsub.s32 %v91, %v220
    %v222 = vsub.s32 %v95, %v220
    %v223 = vsub.s32 %v99, %v220
    %v224 = vsub.s32 %v103, %v220
    %v225 = vsub.s32 %v107, %v220
    %v226 = vsub.s32 %v111, %v220
    %v227 = vsub.s32 %v115, %v220
    %v228 = vsub.s32 %v119, %v220
    %v229 = vsub.s32 %v123, %v220
    %v230 = vsub.s32 %v127, %v220
    %v231 = vsub.s32 %v131, %v220
    %v232 = vsub.s32 %v135, %v220
    %v233 = vsub.s32 %v139, %v220
    %v234 = vsub.s32 %v143, %v220
    %v235 = vsub.s32 %v147, %v220
    %v236 = vsub.s32 %v151, %v220
    %v237 = vsub.s32 %v158, %v220
    %v238 = vsub.s32 %v162, %v220
    %v239 = vsub.s32 %v166, %v220
    %v240 = vsub.s32 %v170, %v220
    %v241 = vsub.s32 %v174, %v220
    %v242 = vsub.s32 %v178, %v220
    %v243 = vsub.s32 %v182, %v220
    %v244 = vsub.s32 %v186, %v220
    %v245 = vsub.s32 %v190, %v220
    %v246 = vsub.s32 %v194, %v220
    %v247 = vsub.s32 %v198, %v220
    %v248 = vsub.s32 %v202, %v220
    %v249 = vsub.s32 %v206, %v220
    %v250 = vsub.s32 %v210, %v220
    %v251 = vsub.s32 %v214, %v220
    %v252 = vsub.s32 %v218, %v220
    %vm253 = vcmp.eq.s32.totalorder %v76, %v221
    %vm254 = vcmp.eq.s32.totalorder %v76, %v222
    %vm255 = vcmp.eq.s32.totalorder %v76, %v223
    %vm256 = vcmp.eq.s32.totalorder %v76, %v224
    %vm257 = vcmp.eq.s32.totalorder %v76, %v225
    %vm258 = vcmp.eq.s32.totalorder %v76, %v226
    %vm259 = vcmp.eq.s32.totalorder %v76, %v227
    %vm260 = vcmp.eq.s32.totalorder %v76, %v228
    %vm261 = vcmp.eq.s32.totalorder %v76, %v229
    %vm262 = vcmp.eq.s32.totalorder %v76, %v230
    %vm263 = vcmp.eq.s32.totalorder %v76, %v231
    %vm264 = vcmp.eq.s32.totalorder %v76, %v232
    %vm265 = vcmp.eq.s32.totalorder %v76, %v233
    %vm266 = vcmp.eq.s32.totalorder %v76, %v234
    %vm267 = vcmp.eq.s32.totalorder %v76, %v235
    %vm268 = vcmp.eq.s32.totalorder %v76, %v236
    %vm269 = vcmp.eq.s32.totalorder %v76, %v237
    %vm270 = vcmp.eq.s32.totalorder %v76, %v238
    %vm271 = vcmp.eq.s32.totalorder %v76, %v239
    %vm272 = vcmp.eq.s32.totalorder %v76, %v240
    %vm273 = vcmp.eq.s32.totalorder %v76, %v241
    %vm274 = vcmp.eq.s32.totalorder %v76, %v242
    %vm275 = vcmp.eq.s32.totalorder %v76, %v243
    %vm276 = vcmp.eq.s32.totalorder %v76, %v244
    %vm277 = vcmp.eq.s32.totalorder %v76, %v245
    %vm278 = vcmp.eq.s32.totalorder %v76, %v246
    %vm279 = vcmp.eq.s32.totalorder %v76, %v247
    %vm280 = vcmp.eq.s32.totalorder %v76, %v248
    %vm281 = vcmp.eq.s32.totalorder %v76, %v249
    %vm282 = vcmp.eq.s32.totalorder %v76, %v250
    %vm283 = vcmp.eq.s32.totalorder %v76, %v251
    %vm284 = vcmp.eq.s32.totalorder %v76, %v252
    %v285 = vsel %vm253, 1, 0
    %v286 = vsel %vm254, 1, 0
    %v287 = vsel %vm255, 1, 0
    %v288 = vsel %vm256, 1, 0
    %v289 = vsel %vm257, 1, 0
    %v290 = vsel %vm258, 1, 0
    %v291 = vsel %vm259, 1, 0
    %v292 = vsel %vm260, 1, 0
    %v293 = vsel %vm261, 1, 0
    %v294 = vsel %vm262, 1, 0
    %v295 = vsel %vm263, 1, 0
    %v296 = vsel %vm264, 1, 0
    %v297 = vsel %vm265, 1, 0
    %v298 = vsel %vm266, 1, 0
    %v299 = vsel %vm267, 1, 0
    %v300 = vsel %vm268, 1, 0
    %v301 = vsel %vm269, 1, 0
    %v302 = vsel %vm270, 1, 0
    %v303 = vsel %vm271, 1, 0
    %v304 = vsel %vm272, 1, 0
    %v305 = vsel %vm273, 1, 0
    %v306 = vsel %vm274, 1, 0
    %v307 = vsel %vm275, 1, 0
    %v308 = vsel %vm276, 1, 0
    %v309 = vsel %vm277, 1, 0
    %v310 = vsel %vm278, 1, 0
    %v311 = vsel %vm279, 1, 0
    %v312 = vsel %vm280, 1, 0
    %v313 = vsel %vm281, 1, 0
    %v314 = vsel %vm282, 1, 0
    %v315 = vsel %vm283, 1, 0
    %v316 = vsel %vm284, 1, 0
    %v317 = vcvt.s32.f32 %v285
    %v318 = vcvt.s32.f32 %v286
    %v319 = vcvt.s32.f32 %v287
    %v320 = vcvt.s32.f32 %v288
    %v321 = vcvt.s32.f32 %v289
    %v322 = vcvt.s32.f32 %v290
    %v323 = vcvt.s32.f32 %v291
    %v324 = vcvt.s32.f32 %v292
    %v325 = vcvt.s32.f32 %v293
    %v326 = vcvt.s32.f32 %v294
    %v327 = vcvt.s32.f32 %v295
    %v328 = vcvt.s32.f32 %v296
    %v329 = vcvt.s32.f32 %v297
    %v330 = vcvt.s32.f32 %v298
    %v331 = vcvt.s32.f32 %v299
    %v332 = vcvt.s32.f32 %v300
    %v333 = vcvt.s32.f32 %v301
    %v334 = vcvt.s32.f32 %v302
    %v335 = vcvt.s32.f32 %v303
    %v336 = vcvt.s32.f32 %v304
    %v337 = vcvt.s32.f32 %v305
    %v338 = vcvt.s32.f32 %v306
    %v339 = vcvt.s32.f32 %v307
    %v340 = vcvt.s32.f32 %v308
    %v341 = vcvt.s32.f32 %v309
    %v342 = vcvt.s32.f32 %v310
    %v343 = vcvt.s32.f32 %v311
    %v344 = vcvt.s32.f32 %v312
    %v345 = vcvt.s32.f32 %v313
    %v346 = vcvt.s32.f32 %v314
    %v347 = vcvt.s32.f32 %v315
    %v348 = vcvt.s32.f32 %v316
    %v349 = vld [vmem:[#allocation2] sm:$0xff]
    %v350 = vld [vmem:[#allocation2 + $0x8] sm:$0xff]
    %v351 = vld [vmem:[#allocation2 + $0x10] sm:$0xff]
    %v352 = vld [vmem:[#allocation2 + $0x18] sm:$0xff]
    %v353 = vld [vmem:[#allocation2 + $0x20] sm:$0xff]
    %v354 = vld [vmem:[#allocation2 + $0x28] sm:$0xff]
    %v355 = vld [vmem:[#allocation2 + $0x30] sm:$0xff]
    %v356 = vld [vmem:[#allocation2 + $0x38] sm:$0xff]
    %v357 = vld [vmem:[#allocation2 + $0x40] sm:$0xff]
    %v358 = vld [vmem:[#allocation2 + $0x48] sm:$0xff]
    %v359 = vld [vmem:[#allocation2 + $0x50] sm:$0xff]
    %v360 = vld [vmem:[#allocation2 + $0x58] sm:$0xff]
    %v361 = vld [vmem:[#allocation2 + $0x60] sm:$0xff]
    %v362 = vld [vmem:[#allocation2 + $0x68] sm:$0xff]
    %v363 = vld [vmem:[#allocation2 + $0x70] sm:$0xff]
    %v364 = vld [vmem:[#allocation2 + $0x78] sm:$0xff]
    %v365 = vld [vmem:[#allocation2 + $0x80] sm:$0xff]
    %v366 = vld [vmem:[#allocation2 + $0x88] sm:$0xff]
    %v367 = vld [vmem:[#allocation2 + $0x90] sm:$0xff]
    %v368 = vld [vmem:[#allocation2 + $0x98] sm:$0xff]
    %v369 = vld [vmem:[#allocation2 + $0xa0] sm:$0xff]
    %v370 = vld [vmem:[#allocation2 + $0xa8] sm:$0xff]
    %v371 = vld [vmem:[#allocation2 + $0xb0] sm:$0xff]
    %v372 = vld [vmem:[#allocation2 + $0xb8] sm:$0xff]
    %v373 = vld [vmem:[#allocation2 + $0xc0] sm:$0xff]
    %v374 = vld [vmem:[#allocation2 + $0xc8] sm:$0xff]
    %v375 = vld [vmem:[#allocation2 + $0xd0] sm:$0xff]
    %v376 = vld [vmem:[#allocation2 + $0xd8] sm:$0xff]
    %v377 = vld [vmem:[#allocation2 + $0xe0] sm:$0xff]
    %v378 = vld [vmem:[#allocation2 + $0xe8] sm:$0xff]
    %v379 = vld [vmem:[#allocation2 + $0xf0] sm:$0xff]
    %v380 = vld [vmem:[#allocation2 + $0xf8] sm:$0xff]
    %v381 = vld [vmem:[#allocation6] sm:$0xff]
    %v382 = vld [vmem:[#allocation6 + $0x8] sm:$0xff]
    %v383 = vld [vmem:[#allocation6 + $0x10] sm:$0xff]
    %v384 = vld [vmem:[#allocation6 + $0x18] sm:$0xff]
    %v385 = vld [vmem:[#allocation6 + $0x20] sm:$0xff]
    %v386 = vld [vmem:[#allocation6 + $0x28] sm:$0xff]
    %v387 = vld [vmem:[#allocation6 + $0x30] sm:$0xff]
    %v388 = vld [vmem:[#allocation6 + $0x38] sm:$0xff]
    %v389 = vld [vmem:[#allocation6 + $0x40] sm:$0xff]
    %v390 = vld [vmem:[#allocation6 + $0x48] sm:$0xff]
    %v391 = vld [vmem:[#allocation6 + $0x50] sm:$0xff]
    %v392 = vld [vmem:[#allocation6 + $0x58] sm:$0xff]
    %v393 = vld [vmem:[#allocation6 + $0x60] sm:$0xff]
    %v394 = vld [vmem:[#allocation6 + $0x68] sm:$0xff]
    %v395 = vld [vmem:[#allocation6 + $0x70] sm:$0xff]
    %v396 = vld [vmem:[#allocation6 + $0x78] sm:$0xff]
    %397 = vmatprep.subr.mxu0 0.0
    %398 = vmatpush1.msra.mxu0 %v381
    %399 = vmatprep.subr.mxu0 0.0
    %400 = vmatpush1.msra.mxu0 %v382
    %401 = vmatprep.subr.mxu0 0.0
    %402 = vmatpush1.msra.mxu0 %v383
    %403 = vmatprep.subr.mxu0 0.0
    %404 = vmatpush1.msra.mxu0 %v384
    %405 = vmatprep.subr.mxu0 0.0
    %406 = vmatpush1.msra.mxu0 %v385
    %407 = vmatprep.subr.mxu0 0.0
    %408 = vmatpush1.msra.mxu0 %v386
    %409 = vmatprep.subr.mxu0 0.0
    %410 = vmatpush1.msra.mxu0 %v387
    %411 = vmatprep.subr.mxu0 0.0
    %412 = vmatpush1.msra.mxu0 %v388
    %413 = vmatprep.subr.mxu0 0.0
    %414 = vmatpush1.msra.mxu0 %v389
    %415 = vmatprep.subr.mxu0 0.0
    %416 = vmatpush1.msra.mxu0 %v390
    %417 = vmatprep.subr.mxu0 0.0
    %418 = vmatpush1.msra.mxu0 %v391
    %419 = vmatprep.subr.mxu0 0.0
    %420 = vmatpush1.msra.mxu0 %v392
    %421 = vmatprep.subr.mxu0 0.0
    %422 = vmatpush1.msra.mxu0 %v393
    %423 = vmatprep.subr.mxu0 0.0
    %424 = vmatpush1.msra.mxu0 %v394
    %425 = vmatprep.subr.mxu0 0.0
    %426 = vmatpush1.msra.mxu0 %v395
    %427 = vmatprep.subr.mxu0 0.0
    %428 = vmatpush1.msra.mxu0 %v396
    %429 = vmatprep.subr.mxu0 0.0
    %430 = vmatpush1.msra.mxu0 0.0
    %431 = vmatprep.subr.mxu0 0.0
    %432 = vmatpush1.msra.mxu0 0.0
    %433 = vmatprep.subr.mxu0 0.0
    %434 = vmatpush1.msra.mxu0 0.0
    %435 = vmatprep.subr.mxu0 0.0
    %436 = vmatpush1.msra.mxu0 0.0
    %437 = vmatprep.subr.mxu0 0.0
    %438 = vmatpush1.msra.mxu0 0.0
    %439 = vmatprep.subr.mxu0 0.0
    %440 = vmatpush1.msra.mxu0 0.0
    %441 = vmatprep.subr.mxu0 0.0
    %442 = vmatpush1.msra.mxu0 0.0
    %443 = vmatprep.subr.mxu0 0.0
    %444 = vmatpush1.msra.mxu0 0.0
    %445 = vmatprep.subr.mxu0 0.0
    %446 = vmatpush1.msra.mxu0 0.0
    %447 = vmatprep.subr.mxu0 0.0
    %448 = vmatpush1.msra.mxu0 0.0
    %449 = vmatprep.subr.mxu0 0.0
    %450 = vmatpush1.msra.mxu0 0.0
    %451 = vmatprep.subr.mxu0 0.0
    %452 = vmatpush1.msra.mxu0 0.0
    %453 = vmatprep.subr.mxu0 0.0
    %454 = vmatpush1.msra.mxu0 0.0
    %455 = vmatprep.subr.mxu0 0.0
    %456 = vmatpush1.msra.mxu0 0.0
    %457 = vmatprep.subr.mxu0 0.0
    %458 = vmatpush1.msra.mxu0 0.0
    %459 = vmatprep.subr.mxu0 0.0
    %460 = vmatpush1.msra.mxu0 0.0
    %461 = vmatprep.mubr.f32.mxu0 0.0
    %462 = vmatmul.mubr.f32.gmra.mrb[0].mxu0 %v317
    %v463 = vpop.f32.mrb[0].mxu0
    %v464 = vadd.f32 0.0, %v463
    %v465 = vpop.f32.mrb[0].mxu0
    %466 = vmatprep.mubr.f32.mxu0 0.0
    %467 = vmatmul.mubr.f32.gmra.mrb[0].mxu0 %v318
    %v468 = vpop.f32.mrb[0].mxu0
    %v469 = vadd.f32 0.0, %v468
    %v470 = vpop.f32.mrb[0].mxu0
    %471 = vmatprep.mubr.f32.mxu0 0.0
    %472 = vmatmul.mubr.f32.gmra.mrb[0].mxu0 %v319
    %v473 = vpop.f32.mrb[0].mxu0
    %v474 = vadd.f32 0.0, %v473
    %v475 = vpop.f32.mrb[0].mxu0
    %476 = vmatprep.mubr.f32.mxu0 0.0
    %477 = vmatmul.mubr.f32.gmra.mrb[0].mxu0 %v320
    %v478 = vpop.f32.mrb[0].mxu0
    %v479 = vadd.f32 0.0, %v478
    %v480 = vpop.f32.mrb[0].mxu0
    %481 = vmatprep.mubr.f32.mxu0 0.0
    %482 = vmatmul.mubr.f32.gmra.mrb[0].mxu0 %v321
    %v483 = vpop.f32.mrb[0].mxu0
    %v484 = vadd.f32 0.0, %v483
    %v485 = vpop.f32.mrb[0].mxu0
    %486 = vmatprep.mubr.f32.mxu0 0.0
    %487 = vmatmul.mubr.f32.gmra.mrb[0].mxu0 %v322
    %v488 = vpop.f32.mrb[0].mxu0
    %v489 = vadd.f32 0.0, %v488
    %v490 = vpop.f32.mrb[0].mxu0
    %491 = vmatprep.mubr.f32.mxu0 0.0
    %492 = vmatmul.mubr.f32.gmra.mrb[0].mxu0 %v323
    %v493 = vpop.f32.mrb[0].mxu0
    %v494 = vadd.f32 0.0, %v493
    %v495 = vpop.f32.mrb[0].mxu0
    %496 = vmatprep.mubr.f32.mxu0 0.0
    %497 = vmatmul.mubr.f32.gmra.mrb[0].mxu0 %v324
    %v498 = vpop.f32.mrb[0].mxu0
    %v499 = vadd.f32 0.0, %v498
    %v500 = vpop.f32.mrb[0].mxu0
    %501 = vmatprep.mubr.f32.mxu0 0.0
    %502 = vmatmul.mubr.f32.gmra.mrb[0].mxu0 %v325
    %v503 = vpop.f32.mrb[0].mxu0
    %v504 = vadd.f32 0.0, %v503
    %v505 = vpop.f32.mrb[0].mxu0
    %506 = vmatprep.mubr.f32.mxu0 0.0
    %507 = vmatmul.mubr.f32.gmra.mrb[0].mxu0 %v326
    %v508 = vpop.f32.mrb[0].mxu0
    %v509 = vadd.f32 0.0, %v508
    %v510 = vpop.f32.mrb[0].mxu0
    %511 = vmatprep.mubr.f32.mxu0 0.0
    %512 = vmatmul.mubr.f32.gmra.mrb[0].mxu0 %v327
    %v513 = vpop.f32.mrb[0].mxu0
    %v514 = vadd.f32 0.0, %v513
    %v515 = vpop.f32.mrb[0].mxu0
    %516 = vmatprep.mubr.f32.mxu0 0.0
    %517 = vmatmul.mubr.f32.gmra.mrb[0].mxu0 %v328
    %v518 = vpop.f32.mrb[0].mxu0
    %v519 = vadd.f32 0.0, %v518
    %v520 = vpop.f32.mrb[0].mxu0
    %521 = vmatprep.mubr.f32.mxu0 0.0
    %522 = vmatmul.mubr.f32.gmra.mrb[0].mxu0 %v329
    %v523 = vpop.f32.mrb[0].mxu0
    %v524 = vadd.f32 0.0, %v523
    %v525 = vpop.f32.mrb[0].mxu0
    %526 = vmatprep.mubr.f32.mxu0 0.0
    %527 = vmatmul.mubr.f32.gmra.mrb[0].mxu0 %v330
    %v528 = vpop.f32.mrb[0].mxu0
    %v529 = vadd.f32 0.0, %v528
    %v530 = vpop.f32.mrb[0].mxu0
    %531 = vmatprep.mubr.f32.mxu0 0.0
    %532 = vmatmul.mubr.f32.gmra.mrb[0].mxu0 %v331
    %v533 = vpop.f32.mrb[0].mxu0
    %v534 = vadd.f32 0.0, %v533
    %v535 = vpop.f32.mrb[0].mxu0
    %536 = vmatprep.mubr.f32.mxu0 0.0
    %537 = vmatmul.mubr.f32.gmra.mrb[0].mxu0 %v332
    %v538 = vpop.f32.mrb[0].mxu0
    %v539 = vadd.f32 0.0, %v538
    %v540 = vpop.f32.mrb[0].mxu0
    %541 = vmatprep.mubr.f32.mxu0 0.0
    %542 = vmatmul.mubr.f32.gmra.mrb[0].mxu0 %v333
    %v543 = vpop.f32.mrb[0].mxu0
    %v544 = vadd.f32 0.0, %v543
    %v545 = vpop.f32.mrb[0].mxu0
    %546 = vmatprep.mubr.f32.mxu0 0.0
    %547 = vmatmul.mubr.f32.gmra.mrb[0].mxu0 %v334
    %v548 = vpop.f32.mrb[0].mxu0
    %v549 = vadd.f32 0.0, %v548
    %v550 = vpop.f32.mrb[0].mxu0
    %551 = vmatprep.mubr.f32.mxu0 0.0
    %552 = vmatmul.mubr.f32.gmra.mrb[0].mxu0 %v335
    %v553 = vpop.f32.mrb[0].mxu0
    %v554 = vadd.f32 0.0, %v553
    %v555 = vpop.f32.mrb[0].mxu0
    %556 = vmatprep.mubr.f32.mxu0 0.0
    %557 = vmatmul.mubr.f32.gmra.mrb[0].mxu0 %v336
    %v558 = vpop.f32.mrb[0].mxu0
    %v559 = vadd.f32 0.0, %v558
    %v560 = vpop.f32.mrb[0].mxu0
    %561 = vmatprep.mubr.f32.mxu0 0.0
    %562 = vmatmul.mubr.f32.gmra.mrb[0].mxu0 %v337
    %v563 = vpop.f32.mrb[0].mxu0
    %v564 = vadd.f32 0.0, %v563
    %v565 = vpop.f32.mrb[0].mxu0
    %566 = vmatprep.mubr.f32.mxu0 0.0
    %567 = vmatmul.mubr.f32.gmra.mrb[0].mxu0 %v338
    %v568 = vpop.f32.mrb[0].mxu0
    %v569 = vadd.f32 0.0, %v568
    %v570 = vpop.f32.mrb[0].mxu0
    %571 = vmatprep.mubr.f32.mxu0 0.0
    %572 = vmatmul.mubr.f32.gmra.mrb[0].mxu0 %v339
    %v573 = vpop.f32.mrb[0].mxu0
    %v574 = vadd.f32 0.0, %v573
    %v575 = vpop.f32.mrb[0].mxu0
    %576 = vmatprep.mubr.f32.mxu0 0.0
    %577 = vmatmul.mubr.f32.gmra.mrb[0].mxu0 %v340
    %v578 = vpop.f32.mrb[0].mxu0
    %v579 = vadd.f32 0.0, %v578
    %v580 = vpop.f32.mrb[0].mxu0
    %581 = vmatprep.mubr.f32.mxu0 0.0
    %582 = vmatmul.mubr.f32.gmra.mrb[0].mxu0 %v341
    %v583 = vpop.f32.mrb[0].mxu0
    %v584 = vadd.f32 0.0, %v583
    %v585 = vpop.f32.mrb[0].mxu0
    %586 = vmatprep.mubr.f32.mxu0 0.0
    %587 = vmatmul.mubr.f32.gmra.mrb[0].mxu0 %v342
    %v588 = vpop.f32.mrb[0].mxu0
    %v589 = vadd.f32 0.0, %v588
    %v590 = vpop.f32.mrb[0].mxu0
    %591 = vmatprep.mubr.f32.mxu0 0.0
    %592 = vmatmul.mubr.f32.gmra.mrb[0].mxu0 %v343
    %v593 = vpop.f32.mrb[0].mxu0
    %v594 = vadd.f32 0.0, %v593
    %v595 = vpop.f32.mrb[0].mxu0
    %596 = vmatprep.mubr.f32.mxu0 0.0
    %597 = vmatmul.mubr.f32.gmra.mrb[0].mxu0 %v344
    %v598 = vpop.f32.mrb[0].mxu0
    %v599 = vadd.f32 0.0, %v598
    %v600 = vpop.f32.mrb[0].mxu0
    %601 = vmatprep.mubr.f32.mxu0 0.0
    %602 = vmatmul.mubr.f32.gmra.mrb[0].mxu0 %v345
    %v603 = vpop.f32.mrb[0].mxu0
    %v604 = vadd.f32 0.0, %v603
    %v605 = vpop.f32.mrb[0].mxu0
    %606 = vmatprep.mubr.f32.mxu0 0.0
    %607 = vmatmul.mubr.f32.gmra.mrb[0].mxu0 %v346
    %v608 = vpop.f32.mrb[0].mxu0
    %v609 = vadd.f32 0.0, %v608
    %v610 = vpop.f32.mrb[0].mxu0
    %611 = vmatprep.mubr.f32.mxu0 0.0
    %612 = vmatmul.mubr.f32.gmra.mrb[0].mxu0 %v347
    %v613 = vpop.f32.mrb[0].mxu0
    %v614 = vadd.f32 0.0, %v613
    %v615 = vpop.f32.mrb[0].mxu0
    %616 = vmatprep.mubr.f32.mxu0 0.0
    %617 = vmatmul.mubr.f32.gmra.mrb[0].mxu0 %v348
    %v618 = vpop.f32.mrb[0].mxu0
    %v619 = vadd.f32 0.0, %v618
    %v620 = vpop.f32.mrb[0].mxu0
    %621 = vdwg.mxu0
    %v622 = vadd.f32 %v349, %v464
    %v623 = vadd.f32 %v350, %v469
    %v624 = vadd.f32 %v351, %v474
    %v625 = vadd.f32 %v352, %v479
    %v626 = vadd.f32 %v353, %v484
    %v627 = vadd.f32 %v354, %v489
    %v628 = vadd.f32 %v355, %v494
    %v629 = vadd.f32 %v356, %v499
    %v630 = vadd.f32 %v357, %v504
    %v631 = vadd.f32 %v358, %v509
    %v632 = vadd.f32 %v359, %v514
    %v633 = vadd.f32 %v360, %v519
    %v634 = vadd.f32 %v361, %v524
    %v635 = vadd.f32 %v362, %v529
    %v636 = vadd.f32 %v363, %v534
    %v637 = vadd.f32 %v364, %v539
    %v638 = vadd.f32 %v365, %v544
    %v639 = vadd.f32 %v366, %v549
    %v640 = vadd.f32 %v367, %v554
    %v641 = vadd.f32 %v368, %v559
    %v642 = vadd.f32 %v369, %v564
    %v643 = vadd.f32 %v370, %v569
    %v644 = vadd.f32 %v371, %v574
    %v645 = vadd.f32 %v372, %v579
    %v646 = vadd.f32 %v373, %v584
    %v647 = vadd.f32 %v374, %v589
    %v648 = vadd.f32 %v375, %v594
    %v649 = vadd.f32 %v376, %v599
    %v650 = vadd.f32 %v377, %v604
    %v651 = vadd.f32 %v378, %v609
    %v652 = vadd.f32 %v379, %v614
    %v653 = vadd.f32 %v380, %v619
    %654 = vst [vmem:[#allocation2] sm:$0xff] %v622
    %655 = vst [vmem:[#allocation2 + $0x8] sm:$0xff] %v623
    %656 = vst [vmem:[#allocation2 + $0x10] sm:$0xff] %v624
    %657 = vst [vmem:[#allocation2 + $0x18] sm:$0xff] %v625
    %658 = vst [vmem:[#allocation2 + $0x20] sm:$0xff] %v626
    %659 = vst [vmem:[#allocation2 + $0x28] sm:$0xff] %v627
    %660 = vst [vmem:[#allocation2 + $0x30] sm:$0xff] %v628
    %661 = vst [vmem:[#allocation2 + $0x38] sm:$0xff] %v629
    %662 = vst [vmem:[#allocation2 + $0x40] sm:$0xff] %v630
    %663 = vst [vmem:[#allocation2 + $0x48] sm:$0xff] %v631
    %664 = vst [vmem:[#allocation2 + $0x50] sm:$0xff] %v632
    %665 = vst [vmem:[#allocation2 + $0x58] sm:$0xff] %v633
    %666 = vst [vmem:[#allocation2 + $0x60] sm:$0xff] %v634
    %667 = vst [vmem:[#allocation2 + $0x68] sm:$0xff] %v635
    %668 = vst [vmem:[#allocation2 + $0x70] sm:$0xff] %v636
    %669 = vst [vmem:[#allocation2 + $0x78] sm:$0xff] %v637
    %670 = vst [vmem:[#allocation2 + $0x80] sm:$0xff] %v638
    %671 = vst [vmem:[#allocation2 + $0x88] sm:$0xff] %v639
    %672 = vst [vmem:[#allocation2 + $0x90] sm:$0xff] %v640
    %673 = vst [vmem:[#allocation2 + $0x98] sm:$0xff] %v641
    %674 = vst [vmem:[#allocation2 + $0xa0] sm:$0xff] %v642
    %675 = vst [vmem:[#allocation2 + $0xa8] sm:$0xff] %v643
    %676 = vst [vmem:[#allocation2 + $0xb0] sm:$0xff] %v644
    %677 = vst [vmem:[#allocation2 + $0xb8] sm:$0xff] %v645
    %678 = vst [vmem:[#allocation2 + $0xc0] sm:$0xff] %v646
    %679 = vst [vmem:[#allocation2 + $0xc8] sm:$0xff] %v647
    %680 = vst [vmem:[#allocation2 + $0xd0] sm:$0xff] %v648
    %681 = vst [vmem:[#allocation2 + $0xd8] sm:$0xff] %v649
    %682 = vst [vmem:[#allocation2 + $0xe0] sm:$0xff] %v650
    %683 = vst [vmem:[#allocation2 + $0xe8] sm:$0xff] %v651
    %684 = vst [vmem:[#allocation2 + $0xf0] sm:$0xff] %v652
    %685 = vst [vmem:[#allocation2 + $0xf8] sm:$0xff] %v653
    // Predicated region
    $region22: #{tpu_custom_call.1} parent=1 // pred_check
      %p686 = pneg %p38
    $region23: #{tpu_custom_call.1} parent=1 // pred_check_branch
      %688 = sbr.rel (%p686) target = $region25
    $region24: #{tpu_custom_call.1} parent=1 // pred_region
      %v689 = vld [vmem:[#allocation2] sm:$0xff]
      %v690 = vld [vmem:[#allocation2 + $0x8] sm:$0xff]
      %v691 = vld [vmem:[#allocation2 + $0x10] sm:$0xff]
      %v692 = vld [vmem:[#allocation2 + $0x18] sm:$0xff]
      %v693 = vld [vmem:[#allocation2 + $0x20] sm:$0xff]
      %v694 = vld [vmem:[#allocation2 + $0x28] sm:$0xff]
      %v695 = vld [vmem:[#allocation2 + $0x30] sm:$0xff]
      %v696 = vld [vmem:[#allocation2 + $0x38] sm:$0xff]
      %v697 = vld [vmem:[#allocation2 + $0x40] sm:$0xff]
      %v698 = vld [vmem:[#allocation2 + $0x48] sm:$0xff]
      %v699 = vld [vmem:[#allocation2 + $0x50] sm:$0xff]
      %v700 = vld [vmem:[#allocation2 + $0x58] sm:$0xff]
      %v701 = vld [vmem:[#allocation2 + $0x60] sm:$0xff]
      %v702 = vld [vmem:[#allocation2 + $0x68] sm:$0xff]
      %v703 = vld [vmem:[#allocation2 + $0x70] sm:$0xff]
      %v704 = vld [vmem:[#allocation2 + $0x78] sm:$0xff]
      %v705 = vld [vmem:[#allocation2 + $0x80] sm:$0xff]
      %v706 = vld [vmem:[#allocation2 + $0x88] sm:$0xff]
      %v707 = vld [vmem:[#allocation2 + $0x90] sm:$0xff]
      %v708 = vld [vmem:[#allocation2 + $0x98] sm:$0xff]
      %v709 = vld [vmem:[#allocation2 + $0xa0] sm:$0xff]
      %v710 = vld [vmem:[#allocation2 + $0xa8] sm:$0xff]
      %v711 = vld [vmem:[#allocation2 + $0xb0] sm:$0xff]
      %v712 = vld [vmem:[#allocation2 + $0xb8] sm:$0xff]
      %v713 = vld [vmem:[#allocation2 + $0xc0] sm:$0xff]
      %v714 = vld [vmem:[#allocation2 + $0xc8] sm:$0xff]
      %v715 = vld [vmem:[#allocation2 + $0xd0] sm:$0xff]
      %v716 = vld [vmem:[#allocation2 + $0xd8] sm:$0xff]
      %v717 = vld [vmem:[#allocation2 + $0xe0] sm:$0xff]
      %v718 = vld [vmem:[#allocation2 + $0xe8] sm:$0xff]
      %v719 = vld [vmem:[#allocation2 + $0xf0] sm:$0xff]
      %v720 = vld [vmem:[#allocation2 + $0xf8] sm:$0xff]
      %721 = vst [vmem:[#allocation8] sm:$0xff] %v689
      %722 = vst [vmem:[#allocation8 + $0x8] sm:$0xff] %v690
      %723 = vst [vmem:[#allocation8 + $0x10] sm:$0xff] %v691
      %724 = vst [vmem:[#allocation8 + $0x18] sm:$0xff] %v692
      %725 = vst [vmem:[#allocation8 + $0x20] sm:$0xff] %v693
      %726 = vst [vmem:[#allocation8 + $0x28] sm:$0xff] %v694
      %727 = vst [vmem:[#allocation8 + $0x30] sm:$0xff] %v695
      %728 = vst [vmem:[#allocation8 + $0x38] sm:$0xff] %v696
      %729 = vst [vmem:[#allocation8 + $0x40] sm:$0xff] %v697
      %730 = vst [vmem:[#allocation8 + $0x48] sm:$0xff] %v698
      %731 = vst [vmem:[#allocation8 + $0x50] sm:$0xff] %v699
      %732 = vst [vmem:[#allocation8 + $0x58] sm:$0xff] %v700
      %733 = vst [vmem:[#allocation8 + $0x60] sm:$0xff] %v701
      %734 = vst [vmem:[#allocation8 + $0x68] sm:$0xff] %v702
      %735 = vst [vmem:[#allocation8 + $0x70] sm:$0xff] %v703
      %736 = vst [vmem:[#allocation8 + $0x78] sm:$0xff] %v704
      %737 = vst [vmem:[#allocation8 + $0x80] sm:$0xff] %v705
      %738 = vst [vmem:[#allocation8 + $0x88] sm:$0xff] %v706
      %739 = vst [vmem:[#allocation8 + $0x90] sm:$0xff] %v707
      %740 = vst [vmem:[#allocation8 + $0x98] sm:$0xff] %v708
      %741 = vst [vmem:[#allocation8 + $0xa0] sm:$0xff] %v709
      %742 = vst [vmem:[#allocation8 + $0xa8] sm:$0xff] %v710
      %743 = vst [vmem:[#allocation8 + $0xb0] sm:$0xff] %v711
      %744 = vst [vmem:[#allocation8 + $0xb8] sm:$0xff] %v712
      %745 = vst [vmem:[#allocation8 + $0xc0] sm:$0xff] %v713
      %746 = vst [vmem:[#allocation8 + $0xc8] sm:$0xff] %v714
      %747 = vst [vmem:[#allocation8 + $0xd0] sm:$0xff] %v715
      %748 = vst [vmem:[#allocation8 + $0xd8] sm:$0xff] %v716
      %749 = vst [vmem:[#allocation8 + $0xe0] sm:$0xff] %v717
      %750 = vst [vmem:[#allocation8 + $0xe8] sm:$0xff] %v718
      %751 = vst [vmem:[#allocation8 + $0xf0] sm:$0xff] %v719
      %752 = vst [vmem:[#allocation8 + $0xf8] sm:$0xff] %v720
    $region25: #{tpu_custom_call.1} parent=1 // pred_fallthru
      _
    // Predicated region
    $region26: #{tpu_custom_call.1} parent=1 // pred_check
      _
    $region27: #{tpu_custom_call.1} parent=1 // pred_check_branch
      %754 = sbr.rel (0) target = $region29
    $region28: #{tpu_custom_call.1} parent=1 // pred_region
      %s756 = ssub.s32 4096, 4096
      %757 = vsyncadd [#allocation5], %s756
      %s758 = sshll.u32 [#allocation8], 4
      %s759 = int_to_ptr.vmem [resolvable:$true] %s758
      %764 = dma.vmem_to_hbm [thread:$0]  %s759, 4096, %s2, [#allocation5], 128, 128, 8
    $region29: #{tpu_custom_call.1} parent=1 // pred_fallthru
      _
    // Predicated region
    $region30: #{tpu_custom_call.1} parent=1 // pred_check
      _
    $region31: #{tpu_custom_call.1} parent=1 // pred_check_branch
      %766 = sbr.rel (0) target = $region33
    $region32: #{tpu_custom_call.1} parent=1 // pred_region
      %767 = dma.done [#allocation5], 4096
    $region33: #{tpu_custom_call.1} parent=1 // pred_fallthru
      _
    %768 = vsyncpa [#allocation4], 1
    %769 = vsyncpa [#allocation7], 1
    %770 = vsyncpa [#allocation5], 1

</llo_original>
